<compile_context>
chip_gen: v5e
topology: v5e:2x2
jax: 0.10.0
libtpu: 0.0.40
codegen_flags: <defaults>
</compile_context>

<pallas_src>
import functools

import jax
import jax.numpy as jnp
from jax.experimental import pallas as pl
from jax.experimental.pallas import tpu as pltpu


# ---------------------------------------------------------------------------
# Kernels
# ---------------------------------------------------------------------------

def _linear_kernel_single_k(x_ref, w_ref, o_ref):
    """Whole reduction in one tile: write the output tile directly (no scratch)."""
    o_ref[...] = jnp.dot(
        x_ref[...], w_ref[...], preferred_element_type=jnp.float32
    ).astype(o_ref.dtype)


def _linear_kernel_multi_k(x_ref, w_ref, o_ref, acc_ref):
    """Accumulate over the K grid axis (axis 2) in an f32 VMEM scratch tile."""
    @pl.when(pl.program_id(2) == 0)
    def _():
        acc_ref[...] = jnp.zeros_like(acc_ref)

    acc_ref[...] += jnp.dot(
        x_ref[...], w_ref[...], preferred_element_type=jnp.float32
    )

    @pl.when(pl.program_id(2) == pl.num_programs(2) - 1)
    def _():
        o_ref[...] = acc_ref[...].astype(o_ref.dtype)


# ---------------------------------------------------------------------------
# Tile / budget selection helpers (pure Python, trace-time)
# ---------------------------------------------------------------------------

def _cdiv(a, b):
    return -(-a // b)


def _round_up(x, m):
    return _cdiv(x, m) * m


def _largest_divisor_tile(dim, target, align):
    """Largest multiple of `align` that divides `dim` and is <= target; else full dim."""
    if dim <= target:
        return dim
    t = (target // align) * align
    while t >= align:
        if dim % t == 0:
            return t
        t -= align
    return dim  # full extent is always a legal block shape


@functools.lru_cache(maxsize=None)
def _vmem_budget_bytes():
    """~85% of this generation's physical VMEM (v5e/v6e: 128 MiB, v7x: 64 MiB)."""
    cap = 64 * 1024 * 1024
    try:
        info = pltpu.get_tpu_info()
        cap = int(getattr(info, "vmem_capacity_bytes", cap))
    except Exception:
        pass
    return int(cap * 0.85)


def _select_tiles(m, d_in, d_out, in_bytes, w_bytes, out_bytes, sub_align, budget,
                  tm, tn, tk):
    big_vmem = budget >= 80 * 1024 * 1024  # v5e / v6e (128 MiB physical)

    # tk: prefer the full reduction in one tile -> single-k fast path (no scratch).
    if tk is None:
        k_cap = 4096 if in_bytes <= 2 else 2048
        tk = d_in if d_in <= k_cap else _largest_divisor_tile(d_in, 512, 128)

    # tn: lane-dense (multiple of 128) whenever D_out allows; large stripes reduce
    # x re-streaming (x is re-read from HBM once per j-stripe).
    if tn is None:
        if d_out % 128 == 0:
            tn = _largest_divisor_tile(d_out, 2048 if big_vmem else 1024, 128)
        else:
            tn = d_out  # full extent (legal block shape even when not 128-aligned)

    # tm: large, never degenerate -- M gets zero-padded up to a multiple of tm.
    if tm is None:
        tm = min(1024 if big_vmem else 512, _round_up(m, sub_align))

    def working_set(tm_, tn_, tk_):
        acc = 0 if tk_ == d_in else tm_ * tn_ * 4  # f32 scratch only in multi-k path
        return (2 * (tm_ * tk_ * in_bytes + tk_ * tn_ * w_bytes)
                + acc + 2 * tm_ * tn_ * out_bytes)

    # Fit the double-buffered working set into the budget: shrink tm, then tn, then tk.
    while (working_set(tm, tn, tk) > budget
           and tm > max(256, sub_align) and tm % (2 * sub_align) == 0):
        tm //= 2
    while (working_set(tm, tn, tk) > budget
           and tn > 512 and tn % 256 == 0 and d_out % (tn // 2) == 0):
        tn //= 2
    while (working_set(tm, tn, tk) > budget
           and tk > 512 and tk % 256 == 0 and d_in % (tk // 2) == 0):
        tk //= 2

    # v7x: keep both TensorCores busy -- don't let the parallel grid collapse to one
    # block when there is enough M to split (keep tm >= 256 for the 256-wide MXU).
    n_j = d_out // tn
    n_i = _cdiv(m, tm)
    if n_j * n_i == 1 and tm >= 512 and m > tm // 2:
        tm //= 2

    return tm, tn, tk, working_set(tm, tn, tk)


# ---------------------------------------------------------------------------
# Public API
# ---------------------------------------------------------------------------

def prepare_weight(weight):
    """One-time (amortized) layout prep: PyTorch (D_out, D_in) -> (D_in, D_out)."""
    return jnp.transpose(jnp.asarray(weight))


@functools.partial(jax.jit, static_argnames=("tm", "tn", "tk"))
def linear_projection(x, weight_t, *, tm=None, tn=None, tk=None):
    """y = x @ W.T, with weight_t = W.T of shape (D_in, D_out) (see prepare_weight)."""
    orig_shape = x.shape
    d_in = orig_shape[-1]
    d_in_w, d_out = weight_t.shape
    assert d_in_w == d_in, "weight_t must be (D_in, D_out)"

    # Flatten leading dims -> (M, D_in). Glue stays in plain JAX.
    x2d = x.reshape(-1, d_in)
    m = x2d.shape[0]

    in_bytes = jnp.dtype(x2d.dtype).itemsize
    w_bytes = jnp.dtype(weight_t.dtype).itemsize
    out_bytes = in_bytes
    # Sublane packing: 8 (f32) / 16 (bf16) / 32 (8-bit).
    sub_align = {4: 8, 2: 16, 1: 32}.get(in_bytes, 8)

    budget = _vmem_budget_bytes()
    tm, tn, tk, working_set = _select_tiles(
        m, d_in, d_out, in_bytes, w_bytes, out_bytes, sub_align, budget, tm, tn, tk)

    # Pad M up to a multiple of tm instead of shrinking tm (keeps the MXU fed and the
    # grid short); padded rows are sliced off the output below.
    m_pad = _round_up(m, tm)
    if m_pad != m:
        x2d = jnp.pad(x2d, ((0, m_pad - m), (0, 0)))

    assert m_pad % tm == 0 and d_out % tn == 0 and d_in % tk == 0

    n_j = d_out // tn     # output stripes (weight-stationary, outermost)
    n_i = m_pad // tm     # row tiles
    n_k = d_in // tk      # reduction steps
    single_k = (n_k == 1)

    vmem_limit = int(min(max(int(1.5 * working_set), 32 * 1024 * 1024), budget))

    cost = pl.CostEstimate(
        flops=2 * m_pad * d_out * d_in,
        transcendentals=0,
        bytes_accessed=(m_pad * d_in * in_bytes * n_j            # x re-read per j-stripe
                        + d_in * d_out * w_bytes * (1 if single_k else n_i)
                        + m_pad * d_out * out_bytes),
    )

    if single_k:
        # Grid (j, i): weight stripe j stays resident in VMEM across all row tiles i.
        grid = (n_j, n_i)
        kernel = _linear_kernel_single_k
        in_specs = [
            pl.BlockSpec((tm, d_in), lambda j, i: (i, 0)),
            pl.BlockSpec((d_in, tn), lambda j, i: (0, j)),
        ]
        out_specs = pl.BlockSpec((tm, tn), lambda j, i: (i, j))
        scratch_shapes = []
        dim_sem = ("parallel", "parallel")
    else:
        # Grid (j, i, k): reduction innermost, f32 accumulator in VMEM scratch.
        grid = (n_j, n_i, n_k)
        kernel = _linear_kernel_multi_k
        in_specs = [
            pl.BlockSpec((tm, tk), lambda j, i, k: (i, k)),
            pl.BlockSpec((tk, tn), lambda j, i, k: (k, j)),
        ]
        out_specs = pl.BlockSpec((tm, tn), lambda j, i, k: (i, j))
        scratch_shapes = [pltpu.VMEM((tm, tn), jnp.float32)]
        dim_sem = ("parallel", "parallel", "arbitrary")

    y2d = pl.pallas_call(
        kernel,
        out_shape=jax.ShapeDtypeStruct((m_pad, d_out), x.dtype),
        grid_spec=pltpu.PrefetchScalarGridSpec(
            num_scalar_prefetch=0,
            grid=grid,
            in_specs=in_specs,
            out_specs=out_specs,
            scratch_shapes=scratch_shapes,
        ),
        compiler_params=pltpu.CompilerParams(
            dimension_semantics=dim_sem,
            vmem_limit_bytes=vmem_limit,
        ),
        cost_estimate=cost,
    )(x2d, weight_t)

    if m_pad != m:
        y2d = y2d[:m]
    return y2d.reshape(*orig_shape[:-1], d_out)


# ---------------------------------------------------------------------------
# Self-test
# ---------------------------------------------------------------------------

if __name__ == "__main__":
    # Small shapes consistent with the module: D_in=32, D_out=16, batch=8.
    D_in, D_out, batch = 32, 16, 8

    key = jax.random.PRNGKey(0)
    kx, kw, kx3 = jax.random.split(key, 3)

    # PyTorch nn.Linear default init: U(-1/sqrt(D_in), 1/sqrt(D_in)), no bias.
    bound = 1.0 / jnp.sqrt(jnp.float32(D_in))
    weight = jax.random.uniform(
        kw, (D_out, D_in), dtype=jnp.float32, minval=-bound, maxval=bound
    )
    weight_t = prepare_weight(weight)  # one-time layout prep (amortized over calls)

    # 2-D input.
    x = jax.random.normal(kx, (batch, D_in), dtype=jnp.float32)
    y = jax.block_until_ready(linear_projection(x, weight_t))
    y_ref = x @ weight.T
    assert y.shape == (batch, D_out)
    assert jnp.allclose(y, y_ref, atol=1e-5, rtol=1e-5)

    # Leading-dims input (exercises the flatten / M-padding path).
    x3 = jax.random.normal(kx3, (2, 4, D_in), dtype=jnp.float32)
    y3 = jax.block_until_ready(linear_projection(x3, weight_t))
    y3_ref = x3 @ weight.T
    assert y3.shape == (2, 4, D_out)
    assert jnp.allclose(y3, y3_ref, atol=1e-5, rtol=1e-5)

    print("KERNEL_OK")
</pallas_src>

<mosaic_0001>
module attributes {stable_mosaic.version = 11 : i64} {
  func.func @_linear_kernel_single_k(%arg0: i32, %arg1: i32, %arg2: memref<8x32xf32, #tpu.memory_space<vmem>>, %arg3: memref<32x16xf32, #tpu.memory_space<vmem>>, %arg4: memref<8x16xf32, #tpu.memory_space<vmem>>) attributes {dimension_semantics = [#tpu.dimension_semantics<parallel>, #tpu.dimension_semantics<parallel>], iteration_bounds = array<i64: 1, 1>, scalar_prefetch = 0 : i64, scratch_operands = 0 : i64, tpu.core_type = #tpu.core_type<tc>, window_params = [{transform_indices = @transform_0, window_bounds = array<i64: 8, 32>}, {transform_indices = @transform_1, window_bounds = array<i64: 32, 16>}, {transform_indices = @transform_2, window_bounds = array<i64: 8, 16>}]} {
    %c0 = arith.constant 0 : index
    %c0_0 = arith.constant 0 : index
    %0 = vector.load %arg2[%c0, %c0_0] : memref<8x32xf32, #tpu.memory_space<vmem>>, vector<8x32xf32>
    %c0_1 = arith.constant 0 : index
    %c0_2 = arith.constant 0 : index
    %1 = vector.load %arg3[%c0_1, %c0_2] : memref<32x16xf32, #tpu.memory_space<vmem>>, vector<32x16xf32>
    %cst = arith.constant dense<0.000000e+00> : vector<8x16xf32>
    %2 = tpu.matmul %0, %1, %cst {dimension_numbers = #tpu.dot_dimension_numbers<[1], [0], [0], [1], [0, 0, 1, 1], [], []>} : vector<8x32xf32>, vector<32x16xf32>, vector<8x16xf32> -> vector<8x16xf32>
    %c0_3 = arith.constant 0 : index
    %c0_4 = arith.constant 0 : index
    %3 = vector.load %arg4[%c0_3, %c0_4] : memref<8x16xf32, #tpu.memory_space<vmem>>, vector<8x16xf32>
    tpu.vector_store %arg4[%c0_3, %c0_4], %2 {strides = array<i32>} : memref<8x16xf32, #tpu.memory_space<vmem>>, vector<8x16xf32>,
    return
  }
  func.func @transform_0(%arg0: i32, %arg1: i32) -> (i32, i32) {
    %c0_i32 = arith.constant 0 : i32
    %c0_i32_0 = arith.constant 0 : i32
    return %arg1, %c0_i32 : i32, i32
  }
  func.func @transform_1(%arg0: i32, %arg1: i32) -> (i32, i32) {
    %c0_i32 = arith.constant 0 : i32
    %c0_i32_0 = arith.constant 0 : i32
    return %c0_i32, %arg0 : i32, i32
  }
  func.func @transform_2(%arg0: i32, %arg1: i32) -> (i32, i32) {
    %c0_i32 = arith.constant 0 : i32
    return %arg1, %arg0 : i32, i32
  }
}

</mosaic_0001>

<llo_original>
// kernel: linear_projection.1
$region0: #{linear_projection.1}
  #allocation0 [shape = 'u32[]', space=smem, size = 0x4, offset = 0x4, fixed_abs, tag = 'smem constant byte address 0x4 - core index']
  #allocation1 [shape = 'u32[72,128]{1,0:T(1,128)}', space=vmem, size = 0x9000, scoped, tag = 'internal scratch']
  %s0 = inlined_call_operand.vmem [shape: f32[8,32], index: 0, kind: input, shape index: {}]
  %s1 = inlined_call_operand.vmem [shape: f32[32,16], index: 1, kind: input, shape index: {}]
  %s2 = inlined_call_operand.hbm [shape: f32[8,16], index: 2, kind: output, shape index: {}]
  %s3 = sld [smem:[#allocation0]]
  $region18: #{linear_projection.1} parent=0
    _
  %s5 = ssub.s32 1, %s3
  %s6 = scalar_select 0, %s5, %s3
  $region1: #{linear_projection.1} parent=0
    #allocation2 [shape = 'u8[4096]{0}', space=vmem, size = 0x1000, scoped, tag = 'output window, operand 0, single buffered']
    #allocation3 [shape = 's32[1]{0}', space=sflag, size = 0x4, scoped, tag = 'scoped memory for linear_projection.1']
    %7 = vsyncpa [#allocation3], 0
    // Predicated region
    $region2: #{linear_projection.1} parent=1 // pred_check
      _
    $region3: #{linear_projection.1} parent=1 // pred_check_branch
      %9 = sbr.rel (0) target = $region5
    $region4: #{linear_projection.1} parent=1 // pred_region
      _
    $region5: #{linear_projection.1} parent=1 // pred_fallthru
      _
    // Predicated region
    $region6: #{linear_projection.1} parent=1 // pred_check
      _
    $region7: #{linear_projection.1} parent=1 // pred_check_branch
      %11 = sbr.rel (0) target = $region9
    $region8: #{linear_projection.1} parent=1 // pred_region
      _
    $region9: #{linear_projection.1} parent=1 // pred_fallthru
      _
    %v12 = vld [vmem:[%s0] sm:$0xff]
    %v13 = vld [vmem:[%s1] sm:$0xff]
    %v14 = vld [vmem:[%s1 + $0x8] sm:$0xff]
    %v15 = vld [vmem:[%s1 + $0x10] sm:$0xff]
    %v16 = vld [vmem:[%s1 + $0x18] sm:$0xff]
    %vm17 = vcmask 261120
    %v19 = vsel %vm17, %v12, 0
    %21 = vmatpush.msra.mxu0 0.0
    %22 = vmatpush.msra.mxu0 0.0
    %23 = vmatpush.msra.mxu0 0.0
    %24 = vmatpush.msra.mxu0 0.0
    %25 = vmatpush.msra.mxu0 0.0
    %26 = vmatpush.msra.mxu0 0.0
    %27 = vmatpush.msra.mxu0 0.0
    %28 = vmatpush.msra.mxu0 0.0
    %29 = vmatpush.msra.mxu0 0.0
    %30 = vmatpush.msra.mxu0 0.0
    %31 = vmatpush.msra.mxu0 0.0
    %32 = vmatpush.msra.mxu0 0.0
    %33 = vmatpush.msra.mxu0 %v16
    %34 = vmatpush.msra.mxu0 %v15
    %35 = vmatpush.msra.mxu0 %v14
    %36 = vmatpush.msra.mxu0 %v13
    %37 = vmatmul.f32.gmra.mxu0 %v19
    %v38 = vpop.f32.mrf.mxu0
    %v39 = vadd.f32 0.0, %v38
    %40 = vdwg.mxu0
    %vm41 = vcmask 130048
    %42 = vst.msk [vmem:[#allocation2] sm:$0xff] %vm41, %v39
    // Predicated region
    $region10: #{linear_projection.1} parent=1 // pred_check
      _
    $region11: #{linear_projection.1} parent=1 // pred_check_branch
      %44 = sbr.rel (0) target = $region13
    $region12: #{linear_projection.1} parent=1 // pred_region
      %46 = vsyncadd [#allocation3], 0
      %s48 = sshll.u32 [#allocation2], 4
      %s49 = int_to_ptr.vmem [resolvable:$true] %s48
      %s50 = sshll.u32 %s2, 4
      %s51 = int_to_ptr.hbm [resolvable:$true] %s50
      %53 = dma.vmem_to_hbm [thread:$0]  %s49, 128, %s51, [#allocation3]
    $region13: #{linear_projection.1} parent=1 // pred_fallthru
      _
    // Predicated region
    $region14: #{linear_projection.1} parent=1 // pred_check
      _
    $region15: #{linear_projection.1} parent=1 // pred_check_branch
      %55 = sbr.rel (0) target = $region17
    $region16: #{linear_projection.1} parent=1 // pred_region
      %57 = dma.done [#allocation3], 128
    $region17: #{linear_projection.1} parent=1 // pred_fallthru
      _
    %58 = vsyncpa [#allocation3], 1

</llo_original>
